<compile_context>
chip_gen: v7x
topology: tpu7x:2x2x1
jax: 0.10.0
libtpu: 0.0.40
codegen_flags: <defaults>
</compile_context>

<pallas_src>
import functools

import jax
import jax.numpy as jnp
from jax.experimental import pallas as pl
from jax.experimental.pallas import tpu as pltpu


def _round_up(x, m):
    return (x + m - 1) // m * m


def _san1d_kernel(x_ref, w_ref, out_ref, *, kernel_sizes):
    """Fused SAN1d forward for one (TN, L) row tile.

    x_ref   : (TN, L)       f32 VMEM   input rows (channel dim squeezed)
    w_ref   : (F, K_max)    f32 SMEM   zero-padded filter taps (scalar reads)
    out_ref : (TN, L)       f32 VMEM   reconstruction summed over all filters
    """
    x = x_ref[...]

    def shift_lanes(v, s):
        # u[:, t] = v[:, t + s], zero-filled outside [0, L).
        # Pure in-register lane shift (static slice + concat of a zero strip).
        if s == 0:
            return v
        rows, length = v.shape
        if s > 0:
            return jnp.concatenate(
                [v[:, s:], jnp.zeros((rows, s), v.dtype)], axis=1)
        return jnp.concatenate(
            [jnp.zeros((rows, -s), v.dtype), v[:, :length + s]], axis=1)

    def conv_same(v, f, k):
        # "same"-length cross-correlation matching PyTorch _conv1d_same_padding:
        #   out[:, t] = sum_j w[f, j] * v[:, t + j - p],  p = (k - 1) // 2, zero padded.
        p = (k - 1) // 2
        acc = jnp.zeros(v.shape, jnp.float32)
        for j in range(k):  # k is a small static constant -> fully unrolled MACs
            acc = acc + shift_lanes(v, j - p) * w_ref[f, j]
        return acc

    rec = jnp.zeros(x.shape, jnp.float32)
    for f, k in enumerate(kernel_sizes):
        sim = conv_same(x, f, k)
        # TODO(synk): only the Relu1D sparse activation is implemented; the module is
        # parametric in sparse_activation_list (TopK / Extrema variants are not translated).
        act = jnp.maximum(sim, 0.0)
        rec = rec + conv_same(act, f, k)
    out_ref[...] = rec


def san1d_forward(batch_x, weights_list, *, row_block=None,
                  io_vmem_budget=4 * 1024 * 1024):
    """batch_x: (N, 1, L) -> summed reconstruction of shape (N, 1, L), float32."""
    N, C, L = batch_x.shape
    assert C == 1, "SAN1d conv1d weight is (1, 1, K); input channel dim must be 1"
    x2 = batch_x.reshape(N, L).astype(jnp.float32)

    kernel_sizes = tuple(int(w.shape[0]) for w in weights_list)
    k_max = max(kernel_sizes)
    w_packed = jnp.zeros((len(kernel_sizes), k_max), jnp.float32)
    for f, w in enumerate(weights_list):
        w_packed = w_packed.at[f, :kernel_sizes[f]].set(w.astype(jnp.float32))

    # Row tile: multiple of 8 sublanes, sized so the pipelined I/O buffers
    # (2x double-buffered input + 2x output, f32) stay within a small VMEM budget.
    if row_block is None:
        bytes_per_row = 4 * L * 4
        row_block = max(8, min(1024, io_vmem_budget // max(bytes_per_row, 1)))
        row_block = max(8, (row_block // 8) * 8)
    tn = min(row_block, _round_up(N, 8))
    n_padded = _round_up(N, tn)
    if n_padded != N:
        # Extra zero rows are independent under the per-row conv and sliced off below.
        # (For very small N one could fold L-chunks into sublanes instead; not done here.)
        x2 = jnp.pad(x2, ((0, n_padded - N), (0, 0)))

    kern = functools.partial(_san1d_kernel, kernel_sizes=kernel_sizes)
    out = pl.pallas_call(
        kern,
        out_shape=jax.ShapeDtypeStruct((n_padded, L), jnp.float32),
        grid=(n_padded // tn,),
        in_specs=[
            pl.BlockSpec((tn, L), lambda i: (i, 0)),             # signal rows -> VMEM, pipelined
            pl.BlockSpec(memory_space=pltpu.MemorySpace.SMEM),   # filter taps -> SMEM
        ],
        out_specs=pl.BlockSpec((tn, L), lambda i: (i, 0)),
        compiler_params=pltpu.CompilerParams(
            dimension_semantics=("parallel",),    # independent row tiles; v7x megacore sharding
            vmem_limit_bytes=32 * 1024 * 1024,    # explicit, with headroom on all generations
        ),
    )(x2, w_packed)

    if n_padded != N:
        out = out[:N]
    return out.reshape(N, C, L)


def _reference_forward(batch_x, weights_list):
    """Pure-JAX reference mirroring the PyTorch forward (with ReLU sparse activation)."""
    N, C, L = batch_x.shape
    x2 = batch_x.reshape(N, L).astype(jnp.float32)

    def conv_same(x, w):
        K = int(w.shape[0])
        p = (K - 1) // 2
        xp = jnp.pad(x, ((0, 0), (p, K - 1 - p)))
        return sum(xp[:, t:t + L] * w[t] for t in range(K))

    rec = jnp.zeros((N, L), jnp.float32)
    for w in weights_list:
        sim = conv_same(x2, w)
        act = jnp.maximum(sim, 0.0)
        rec = rec + conv_same(act, w)
    return rec.reshape(N, C, L)


if __name__ == "__main__":
    key = jax.random.PRNGKey(0)
    N, C, L = 2, 1, 16
    batch_x = jax.random.normal(key, (N, C, L), dtype=jnp.float32)

    # Deterministic parameter init per the module's __init__: 0.1 * ones(kernel_size)
    kernel_size_list = [5, 4]  # one odd, one even kernel exercises both padding branches
    weights_list = [0.1 * jnp.ones((k,), jnp.float32) for k in kernel_size_list]

    out = san1d_forward(batch_x, weights_list)
    out = jax.block_until_ready(out)

    ref = _reference_forward(batch_x, weights_list)
    assert out.shape == (N, C, L)
    assert jnp.allclose(out, ref, atol=1e-5, rtol=1e-5), "Pallas output mismatches reference"

    print("KERNEL_OK")
</pallas_src>

<mosaic_0001>
module attributes {stable_mosaic.version = 11 : i64} {
  func.func @_san1d_kernel(%arg0: i32, %arg1: memref<8x16xf32, #tpu.memory_space<vmem>>, %arg2: memref<2x5xf32, #tpu.memory_space<smem>>, %arg3: memref<8x16xf32, #tpu.memory_space<vmem>>) attributes {dimension_semantics = [#tpu.dimension_semantics<parallel>], iteration_bounds = array<i64: 1>, scalar_prefetch = 0 : i64, scratch_operands = 0 : i64, tpu.core_type = #tpu.core_type<tc>, window_params = [{transform_indices = @transform_0, window_bounds = array<i64: 8, 16>}, {transform_indices = @transform_1, window_bounds = array<i64: 2, 5>}, {transform_indices = @transform_2, window_bounds = array<i64: 8, 16>}]} {
    %c0 = arith.constant 0 : index
    %c0_0 = arith.constant 0 : index
    %0 = vector.load %arg1[%c0, %c0_0] : memref<8x16xf32, #tpu.memory_space<vmem>>, vector<8x16xf32>
    %cst = arith.constant 0.000000e+00 : f32
    %1 = vector.broadcast %cst : f32 to vector<8x16xf32>
    %cst_1 = arith.constant 0.000000e+00 : f32
    %2 = vector.broadcast %cst_1 : f32 to vector<8x16xf32>
    %cst_2 = arith.constant 0.000000e+00 : f32
    %3 = vector.broadcast %cst_2 : f32 to vector<8x2xf32>
    %4 = vector.extract_strided_slice %0 {offsets = [0, 0], sizes = [8, 14], strides = [1, 1]} : vector<8x16xf32> to vector<8x14xf32>
    %5 = tpu.concatenate %3, %4 in 1 : vector<8x2xf32>, vector<8x14xf32> -> vector<8x16xf32>
    %c0_3 = arith.constant 0 : index
    %c0_4 = arith.constant 0 : index
    %6 = memref.load %arg2[%c0_3, %c0_4] : memref<2x5xf32, #tpu.memory_space<smem>>
    %7 = vector.broadcast %6 : f32 to vector<8x16xf32>
    %8 = arith.mulf %5, %7 : vector<8x16xf32>
    %9 = arith.addf %2, %8 : vector<8x16xf32>
    %cst_5 = arith.constant 0.000000e+00 : f32
    %10 = vector.broadcast %cst_5 : f32 to vector<8x1xf32>
    %11 = vector.extract_strided_slice %0 {offsets = [0, 0], sizes = [8, 15], strides = [1, 1]} : vector<8x16xf32> to vector<8x15xf32>
    %12 = tpu.concatenate %10, %11 in 1 : vector<8x1xf32>, vector<8x15xf32> -> vector<8x16xf32>
    %c0_6 = arith.constant 0 : index
    %c1 = arith.constant 1 : index
    %13 = memref.load %arg2[%c0_6, %c1] : memref<2x5xf32, #tpu.memory_space<smem>>
    %14 = vector.broadcast %13 : f32 to vector<8x16xf32>
    %15 = arith.mulf %12, %14 : vector<8x16xf32>
    %16 = arith.addf %9, %15 : vector<8x16xf32>
    %c0_7 = arith.constant 0 : index
    %c2 = arith.constant 2 : index
    %17 = memref.load %arg2[%c0_7, %c2] : memref<2x5xf32, #tpu.memory_space<smem>>
    %18 = vector.broadcast %17 : f32 to vector<8x16xf32>
    %19 = arith.mulf %0, %18 : vector<8x16xf32>
    %20 = arith.addf %16, %19 : vector<8x16xf32>
    %21 = vector.extract_strided_slice %0 {offsets = [0, 1], sizes = [8, 15], strides = [1, 1]} : vector<8x16xf32> to vector<8x15xf32>
    %cst_8 = arith.constant 0.000000e+00 : f32
    %22 = vector.broadcast %cst_8 : f32 to vector<8x1xf32>
    %23 = tpu.concatenate %21, %22 in 1 : vector<8x15xf32>, vector<8x1xf32> -> vector<8x16xf32>
    %c0_9 = arith.constant 0 : index
    %c3 = arith.constant 3 : index
    %24 = memref.load %arg2[%c0_9, %c3] : memref<2x5xf32, #tpu.memory_space<smem>>
    %25 = vector.broadcast %24 : f32 to vector<8x16xf32>
    %26 = arith.mulf %23, %25 : vector<8x16xf32>
    %27 = arith.addf %20, %26 : vector<8x16xf32>
    %28 = vector.extract_strided_slice %0 {offsets = [0, 2], sizes = [8, 14], strides = [1, 1]} : vector<8x16xf32> to vector<8x14xf32>
    %cst_10 = arith.constant 0.000000e+00 : f32
    %29 = vector.broadcast %cst_10 : f32 to vector<8x2xf32>
    %30 = tpu.concatenate %28, %29 in 1 : vector<8x14xf32>, vector<8x2xf32> -> vector<8x16xf32>
    %c0_11 = arith.constant 0 : index
    %c4 = arith.constant 4 : index
    %31 = memref.load %arg2[%c0_11, %c4] : memref<2x5xf32, #tpu.memory_space<smem>>
    %32 = vector.broadcast %31 : f32 to vector<8x16xf32>
    %33 = arith.mulf %30, %32 : vector<8x16xf32>
    %34 = arith.addf %27, %33 : vector<8x16xf32>
    %cst_12 = arith.constant 0.000000e+00 : f32
    %35 = vector.broadcast %cst_12 : f32 to vector<8x16xf32>
    %36 = arith.maximumf %34, %35 : vector<8x16xf32>
    %cst_13 = arith.constant 0.000000e+00 : f32
    %37 = vector.broadcast %cst_13 : f32 to vector<8x16xf32>
    %cst_14 = arith.constant 0.000000e+00 : f32
    %38 = vector.broadcast %cst_14 : f32 to vector<8x2xf32>
    %39 = vector.extract_strided_slice %36 {offsets = [0, 0], sizes = [8, 14], strides = [1, 1]} : vector<8x16xf32> to vector<8x14xf32>
    %40 = tpu.concatenate %38, %39 in 1 : vector<8x2xf32>, vector<8x14xf32> -> vector<8x16xf32>
    %c0_15 = arith.constant 0 : index
    %c0_16 = arith.constant 0 : index
    %41 = memref.load %arg2[%c0_15, %c0_16] : memref<2x5xf32, #tpu.memory_space<smem>>
    %42 = vector.broadcast %41 : f32 to vector<8x16xf32>
    %43 = arith.mulf %40, %42 : vector<8x16xf32>
    %44 = arith.addf %37, %43 : vector<8x16xf32>
    %cst_17 = arith.constant 0.000000e+00 : f32
    %45 = vector.broadcast %cst_17 : f32 to vector<8x1xf32>
    %46 = vector.extract_strided_slice %36 {offsets = [0, 0], sizes = [8, 15], strides = [1, 1]} : vector<8x16xf32> to vector<8x15xf32>
    %47 = tpu.concatenate %45, %46 in 1 : vector<8x1xf32>, vector<8x15xf32> -> vector<8x16xf32>
    %c0_18 = arith.constant 0 : index
    %c1_19 = arith.constant 1 : index
    %48 = memref.load %arg2[%c0_18, %c1_19] : memref<2x5xf32, #tpu.memory_space<smem>>
    %49 = vector.broadcast %48 : f32 to vector<8x16xf32>
    %50 = arith.mulf %47, %49 : vector<8x16xf32>
    %51 = arith.addf %44, %50 : vector<8x16xf32>
    %c0_20 = arith.constant 0 : index
    %c2_21 = arith.constant 2 : index
    %52 = memref.load %arg2[%c0_20, %c2_21] : memref<2x5xf32, #tpu.memory_space<smem>>
    %53 = vector.broadcast %52 : f32 to vector<8x16xf32>
    %54 = arith.mulf %36, %53 : vector<8x16xf32>
    %55 = arith.addf %51, %54 : vector<8x16xf32>
    %56 = vector.extract_strided_slice %36 {offsets = [0, 1], sizes = [8, 15], strides = [1, 1]} : vector<8x16xf32> to vector<8x15xf32>
    %cst_22 = arith.constant 0.000000e+00 : f32
    %57 = vector.broadcast %cst_22 : f32 to vector<8x1xf32>
    %58 = tpu.concatenate %56, %57 in 1 : vector<8x15xf32>, vector<8x1xf32> -> vector<8x16xf32>
    %c0_23 = arith.constant 0 : index
    %c3_24 = arith.constant 3 : index
    %59 = memref.load %arg2[%c0_23, %c3_24] : memref<2x5xf32, #tpu.memory_space<smem>>
    %60 = vector.broadcast %59 : f32 to vector<8x16xf32>
    %61 = arith.mulf %58, %60 : vector<8x16xf32>
    %62 = arith.addf %55, %61 : vector<8x16xf32>
    %63 = vector.extract_strided_slice %36 {offsets = [0, 2], sizes = [8, 14], strides = [1, 1]} : vector<8x16xf32> to vector<8x14xf32>
    %cst_25 = arith.constant 0.000000e+00 : f32
    %64 = vector.broadcast %cst_25 : f32 to vector<8x2xf32>
    %65 = tpu.concatenate %63, %64 in 1 : vector<8x14xf32>, vector<8x2xf32> -> vector<8x16xf32>
    %c0_26 = arith.constant 0 : index
    %c4_27 = arith.constant 4 : index
    %66 = memref.load %arg2[%c0_26, %c4_27] : memref<2x5xf32, #tpu.memory_space<smem>>
    %67 = vector.broadcast %66 : f32 to vector<8x16xf32>
    %68 = arith.mulf %65, %67 : vector<8x16xf32>
    %69 = arith.addf %62, %68 : vector<8x16xf32>
    %70 = arith.addf %1, %69 : vector<8x16xf32>
    %cst_28 = arith.constant 0.000000e+00 : f32
    %71 = vector.broadcast %cst_28 : f32 to vector<8x16xf32>
    %cst_29 = arith.constant 0.000000e+00 : f32
    %72 = vector.broadcast %cst_29 : f32 to vector<8x1xf32>
    %73 = vector.extract_strided_slice %0 {offsets = [0, 0], sizes = [8, 15], strides = [1, 1]} : vector<8x16xf32> to vector<8x15xf32>
    %74 = tpu.concatenate %72, %73 in 1 : vector<8x1xf32>, vector<8x15xf32> -> vector<8x16xf32>
    %c1_30 = arith.constant 1 : index
    %c0_31 = arith.constant 0 : index
    %75 = memref.load %arg2[%c1_30, %c0_31] : memref<2x5xf32, #tpu.memory_space<smem>>
    %76 = vector.broadcast %75 : f32 to vector<8x16xf32>
    %77 = arith.mulf %74, %76 : vector<8x16xf32>
    %78 = arith.addf %71, %77 : vector<8x16xf32>
    %c1_32 = arith.constant 1 : index
    %c1_33 = arith.constant 1 : index
    %79 = memref.load %arg2[%c1_32, %c1_33] : memref<2x5xf32, #tpu.memory_space<smem>>
    %80 = vector.broadcast %79 : f32 to vector<8x16xf32>
    %81 = arith.mulf %0, %80 : vector<8x16xf32>
    %82 = arith.addf %78, %81 : vector<8x16xf32>
    %83 = vector.extract_strided_slice %0 {offsets = [0, 1], sizes = [8, 15], strides = [1, 1]} : vector<8x16xf32> to vector<8x15xf32>
    %cst_34 = arith.constant 0.000000e+00 : f32
    %84 = vector.broadcast %cst_34 : f32 to vector<8x1xf32>
    %85 = tpu.concatenate %83, %84 in 1 : vector<8x15xf32>, vector<8x1xf32> -> vector<8x16xf32>
    %c1_35 = arith.constant 1 : index
    %c2_36 = arith.constant 2 : index
    %86 = memref.load %arg2[%c1_35, %c2_36] : memref<2x5xf32, #tpu.memory_space<smem>>
    %87 = vector.broadcast %86 : f32 to vector<8x16xf32>
    %88 = arith.mulf %85, %87 : vector<8x16xf32>
    %89 = arith.addf %82, %88 : vector<8x16xf32>
    %90 = vector.extract_strided_slice %0 {offsets = [0, 2], sizes = [8, 14], strides = [1, 1]} : vector<8x16xf32> to vector<8x14xf32>
    %cst_37 = arith.constant 0.000000e+00 : f32
    %91 = vector.broadcast %cst_37 : f32 to vector<8x2xf32>
    %92 = tpu.concatenate %90, %91 in 1 : vector<8x14xf32>, vector<8x2xf32> -> vector<8x16xf32>
    %c1_38 = arith.constant 1 : index
    %c3_39 = arith.constant 3 : index
    %93 = memref.load %arg2[%c1_38, %c3_39] : memref<2x5xf32, #tpu.memory_space<smem>>
    %94 = vector.broadcast %93 : f32 to vector<8x16xf32>
    %95 = arith.mulf %92, %94 : vector<8x16xf32>
    %96 = arith.addf %89, %95 : vector<8x16xf32>
    %cst_40 = arith.constant 0.000000e+00 : f32
    %97 = vector.broadcast %cst_40 : f32 to vector<8x16xf32>
    %98 = arith.maximumf %96, %97 : vector<8x16xf32>
    %cst_41 = arith.constant 0.000000e+00 : f32
    %99 = vector.broadcast %cst_41 : f32 to vector<8x16xf32>
    %cst_42 = arith.constant 0.000000e+00 : f32
    %100 = vector.broadcast %cst_42 : f32 to vector<8x1xf32>
    %101 = vector.extract_strided_slice %98 {offsets = [0, 0], sizes = [8, 15], strides = [1, 1]} : vector<8x16xf32> to vector<8x15xf32>
    %102 = tpu.concatenate %100, %101 in 1 : vector<8x1xf32>, vector<8x15xf32> -> vector<8x16xf32>
    %c1_43 = arith.constant 1 : index
    %c0_44 = arith.constant 0 : index
    %103 = memref.load %arg2[%c1_43, %c0_44] : memref<2x5xf32, #tpu.memory_space<smem>>
    %104 = vector.broadcast %103 : f32 to vector<8x16xf32>
    %105 = arith.mulf %102, %104 : vector<8x16xf32>
    %106 = arith.addf %99, %105 : vector<8x16xf32>
    %c1_45 = arith.constant 1 : index
    %c1_46 = arith.constant 1 : index
    %107 = memref.load %arg2[%c1_45, %c1_46] : memref<2x5xf32, #tpu.memory_space<smem>>
    %108 = vector.broadcast %107 : f32 to vector<8x16xf32>
    %109 = arith.mulf %98, %108 : vector<8x16xf32>
    %110 = arith.addf %106, %109 : vector<8x16xf32>
    %111 = vector.extract_strided_slice %98 {offsets = [0, 1], sizes = [8, 15], strides = [1, 1]} : vector<8x16xf32> to vector<8x15xf32>
    %cst_47 = arith.constant 0.000000e+00 : f32
    %112 = vector.broadcast %cst_47 : f32 to vector<8x1xf32>
    %113 = tpu.concatenate %111, %112 in 1 : vector<8x15xf32>, vector<8x1xf32> -> vector<8x16xf32>
    %c1_48 = arith.constant 1 : index
    %c2_49 = arith.constant 2 : index
    %114 = memref.load %arg2[%c1_48, %c2_49] : memref<2x5xf32, #tpu.memory_space<smem>>
    %115 = vector.broadcast %114 : f32 to vector<8x16xf32>
    %116 = arith.mulf %113, %115 : vector<8x16xf32>
    %117 = arith.addf %110, %116 : vector<8x16xf32>
    %118 = vector.extract_strided_slice %98 {offsets = [0, 2], sizes = [8, 14], strides = [1, 1]} : vector<8x16xf32> to vector<8x14xf32>
    %cst_50 = arith.constant 0.000000e+00 : f32
    %119 = vector.broadcast %cst_50 : f32 to vector<8x2xf32>
    %120 = tpu.concatenate %118, %119 in 1 : vector<8x14xf32>, vector<8x2xf32> -> vector<8x16xf32>
    %c1_51 = arith.constant 1 : index
    %c3_52 = arith.constant 3 : index
    %121 = memref.load %arg2[%c1_51, %c3_52] : memref<2x5xf32, #tpu.memory_space<smem>>
    %122 = vector.broadcast %121 : f32 to vector<8x16xf32>
    %123 = arith.mulf %120, %122 : vector<8x16xf32>
    %124 = arith.addf %117, %123 : vector<8x16xf32>
    %125 = arith.addf %70, %124 : vector<8x16xf32>
    %c0_53 = arith.constant 0 : index
    %c0_54 = arith.constant 0 : index
    %126 = vector.load %arg3[%c0_53, %c0_54] : memref<8x16xf32, #tpu.memory_space<vmem>>, vector<8x16xf32>
    tpu.vector_store %arg3[%c0_53, %c0_54], %125 {strides = array<i32>} : memref<8x16xf32, #tpu.memory_space<vmem>>, vector<8x16xf32>,
    return
  }
  func.func @transform_0(%arg0: i32) -> (i32, i32) {
    %c0_i32 = arith.constant 0 : i32
    %c0_i32_0 = arith.constant 0 : i32
    return %arg0, %c0_i32 : i32, i32
  }
  func.func @transform_1(%arg0: i32) -> (i32, i32) {
    %c0_i32 = arith.constant 0 : i32
    %c0_i32_0 = arith.constant 0 : i32
    %c0_i32_1 = arith.constant 0 : i32
    return %c0_i32, %c0_i32_0 : i32, i32
  }
  func.func @transform_2(%arg0: i32) -> (i32, i32) {
    %c0_i32 = arith.constant 0 : i32
    %c0_i32_0 = arith.constant 0 : i32
    return %arg0, %c0_i32 : i32, i32
  }
}

</mosaic_0001>

<llo_original>
// kernel: tpu_custom_call.1
$region0: #{tpu_custom_call.1}
  #allocation0 [shape = 'u32[]', space=smem, size = 0x4, offset = 0x4, fixed_abs, tag = 'smem constant byte address 0x4 - core index']
  #allocation1 [shape = 'u32[144,128]{1,0:T(1,128)}', space=vmem, size = 0x12000, scoped, tag = 'internal scratch']
  %s0 = inlined_call_operand.hbm [shape: f32[8,16], index: 0, kind: input, shape index: {}]
  %s1 = inlined_call_operand.vmem [shape: f32[2,5], index: 1, kind: input, shape index: {}]
  %s2 = inlined_call_operand.hbm [shape: f32[8,16], index: 2, kind: output, shape index: {}]
  %s3 = sld [smem:[#allocation0]]
  $region26: #{tpu_custom_call.1} parent=0
    _
  %s5 = ssub.s32 1, %s3
  %s6 = scalar_select 0, %s5, %s3
  $region1: #{tpu_custom_call.1} parent=0
    #allocation2 [shape = 'u8[4096]{0}', space=vmem, size = 0x1000, scoped, tag = 'input window, operand 0, single buffered']
    #allocation3 [shape = 's32[1]{0}', space=sflag, size = 0x4, scoped, tag = 'scoped memory for tpu_custom_call.1']
    #allocation4 [shape = 's32[1]{0}', space=sflag, size = 0x4, scoped, tag = 'scoped memory for tpu_custom_call.1']
    #allocation5 [shape = 's32[1]{0}', space=sflag, size = 0x4, scoped, tag = 'scoped memory for tpu_custom_call.1']
    #allocation6 [shape = 'u8[1024]{0}', space=smem, size = 0x400, scoped, tag = 'input window, operand 1, single buffered']
    #allocation7 [shape = 'u8[4096]{0}', space=vmem, size = 0x1000, scoped, tag = 'output window, operand 0, single buffered']
    %7 = vsyncpa [#allocation3], 0
    %8 = vsyncpa [#allocation5], 0
    %9 = vsyncpa [#allocation4], 0
    // Predicated region
    $region2: #{tpu_custom_call.1} parent=1 // pred_check
      _
    $region3: #{tpu_custom_call.1} parent=1 // pred_check_branch
      %11 = sbr.rel (0) target = $region5
    $region4: #{tpu_custom_call.1} parent=1 // pred_region
      %s13 = ssub.s32 128, 128
      %14 = vsyncadd [#allocation3], %s13
      %s16 = sshll.u32 [#allocation2], 4
      %s17 = int_to_ptr.vmem [resolvable:$true] %s16
      %19 = dma.hbm_to_vmem [thread:$0]  %s0, 128, %s17, [#allocation3]
    $region5: #{tpu_custom_call.1} parent=1 // pred_fallthru
      _
    // Predicated region
    $region6: #{tpu_custom_call.1} parent=1 // pred_check
      _
    $region7: #{tpu_custom_call.1} parent=1 // pred_check_branch
      %21 = sbr.rel (0) target = $region9
    $region8: #{tpu_custom_call.1} parent=1 // pred_region
      %s23 = ssub.s32 32, 32
      %24 = vsyncadd [#allocation5], %s23
      %s26 = sshll.u32 %s1, 4
      %s27 = int_to_ptr.vmem [resolvable:$true] %s26
      %29 = dma.vmem_to_smem %s27, 32, [#allocation6], [#allocation5]
    $region9: #{tpu_custom_call.1} parent=1 // pred_fallthru
      _
    // Predicated region
    $region10: #{tpu_custom_call.1} parent=1 // pred_check
      _
    $region11: #{tpu_custom_call.1} parent=1 // pred_check_branch
      %31 = sbr.rel (0) target = $region13
    $region12: #{tpu_custom_call.1} parent=1 // pred_region
      %32 = dma.done [#allocation3], 128
    $region13: #{tpu_custom_call.1} parent=1 // pred_fallthru
      _
    // Predicated region
    $region14: #{tpu_custom_call.1} parent=1 // pred_check
      _
    $region15: #{tpu_custom_call.1} parent=1 // pred_check_branch
      %34 = sbr.rel (0) target = $region17
    $region16: #{tpu_custom_call.1} parent=1 // pred_region
      %35 = dma.done [#allocation5], 32
    $region17: #{tpu_custom_call.1} parent=1 // pred_fallthru
      _
    %36 = sfence
    %v37 = vld [vmem:[#allocation2] sm:$0xff]
    %39 = vrot.lane.b32.xlu0 %v37, 2
    %v40 = vpop.permute.xlu0 %39
    %vm42 = vcmask 15360
    %v43 = vsel %vm42, 0.0, %v40
    %s44 = sld [smem:[#allocation6]]
    %v45 = vstv %s44
    %v46 = vmul.f32 %v43, %v45
    %v47 = vadd.f32 %v46, 0.0
    %48 = vrot.lane.b32.xlu0 %v37, 1
    %v49 = vpop.permute.xlu0 %48
    %vm51 = vcmask 7168
    %v52 = vsel %vm51, 0.0, %v49
    %s53 = sld [smem:[#allocation6 + $0x1]]
    %v54 = vstv %s53
    %v55 = vmul.f32 %v52, %v54
    %v56 = vadd.f32 %v47, %v55
    %s57 = sld [smem:[#allocation6 + $0x2]]
    %v58 = vstv %s57
    %v59 = vmul.f32 %v37, %v58
    %v60 = vadd.f32 %v56, %v59
    %61 = vrot.lane.b32.xlu0 %v37, 127
    %v62 = vpop.permute.xlu0 %61
    %vm64 = vcmask 121856
    %v65 = vsel %vm64, %v62, 0.0
    %s66 = sld [smem:[#allocation6 + $0x3]]
    %v67 = vstv %s66
    %v68 = vmul.f32 %v65, %v67
    %v69 = vadd.f32 %v60, %v68
    %70 = vrot.lane.b32.xlu0 %v37, 126
    %v71 = vpop.permute.xlu0 %70
    %vm73 = vcmask 113664
    %v74 = vsel %vm73, %v71, 0.0
    %s75 = sld [smem:[#allocation6 + $0x4]]
    %v76 = vstv %s75
    %v77 = vmul.f32 %v74, %v76
    %v78 = vadd.f32 %v69, %v77
    %v79 = vmax.f32 %v78, 0.0
    %81 = vrot.lane.b32.xlu0 %v79, 2
    %v82 = vpop.permute.xlu0 %81
    %v84 = vsel %vm42, 0.0, %v82
    %v85 = vmul.f32 %v84, %v45
    %v86 = vadd.f32 %v85, 0.0
    %87 = vrot.lane.b32.xlu0 %v79, 1
    %v88 = vpop.permute.xlu0 %87
    %v90 = vsel %vm51, 0.0, %v88
    %v91 = vmul.f32 %v90, %v54
    %v92 = vadd.f32 %v86, %v91
    %v93 = vmul.f32 %v79, %v58
    %v94 = vadd.f32 %v92, %v93
    %95 = vrot.lane.b32.xlu0 %v79, 127
    %v96 = vpop.permute.xlu0 %95
    %v98 = vsel %vm64, %v96, 0.0
    %v99 = vmul.f32 %v98, %v67
    %v100 = vadd.f32 %v94, %v99
    %101 = vrot.lane.b32.xlu0 %v79, 126
    %v102 = vpop.permute.xlu0 %101
    %v104 = vsel %vm73, %v102, 0.0
    %v105 = vmul.f32 %v104, %v76
    %v106 = vadd.f32 %v100, %v105
    %v107 = vadd.f32 %v106, 0.0
    %s108 = sld [smem:[#allocation6 + $0x80]]
    %v109 = vstv %s108
    %v110 = vmul.f32 %v52, %v109
    %v111 = vadd.f32 %v110, 0.0
    %s112 = sld [smem:[#allocation6 + $0x81]]
    %v113 = vstv %s112
    %v114 = vmul.f32 %v37, %v113
    %v115 = vadd.f32 %v111, %v114
    %s116 = sld [smem:[#allocation6 + $0x82]]
    %v117 = vstv %s116
    %v118 = vmul.f32 %v65, %v117
    %v119 = vadd.f32 %v115, %v118
    %s120 = sld [smem:[#allocation6 + $0x83]]
    %v121 = vstv %s120
    %v122 = vmul.f32 %v74, %v121
    %v123 = vadd.f32 %v119, %v122
    %v124 = vmax.f32 %v123, 0.0
    %126 = vrot.lane.b32.xlu0 %v124, 1
    %v127 = vpop.permute.xlu0 %126
    %v129 = vsel %vm51, 0.0, %v127
    %v130 = vmul.f32 %v129, %v109
    %v131 = vadd.f32 %v130, 0.0
    %v132 = vmul.f32 %v124, %v113
    %v133 = vadd.f32 %v131, %v132
    %134 = vrot.lane.b32.xlu0 %v124, 127
    %v135 = vpop.permute.xlu0 %134
    %v137 = vsel %vm64, %v135, 0.0
    %v138 = vmul.f32 %v137, %v117
    %v139 = vadd.f32 %v133, %v138
    %140 = vrot.lane.b32.xlu0 %v124, 126
    %v141 = vpop.permute.xlu0 %140
    %v143 = vsel %vm73, %v141, 0.0
    %v144 = vmul.f32 %v143, %v121
    %v145 = vadd.f32 %v139, %v144
    %v146 = vadd.f32 %v107, %v145
    %vm147 = vcmask 130048
    %148 = vst.msk [vmem:[#allocation7] sm:$0xff] %vm147, %v146
    // Predicated region
    $region18: #{tpu_custom_call.1} parent=1 // pred_check
      _
    $region19: #{tpu_custom_call.1} parent=1 // pred_check_branch
      %150 = sbr.rel (0) target = $region21
    $region20: #{tpu_custom_call.1} parent=1 // pred_region
      %s152 = ssub.s32 128, 128
      %153 = vsyncadd [#allocation4], %s152
      %s155 = sshll.u32 [#allocation7], 4
      %s156 = int_to_ptr.vmem [resolvable:$true] %s155
      %158 = dma.vmem_to_hbm [thread:$0]  %s156, 128, %s2, [#allocation4]
    $region21: #{tpu_custom_call.1} parent=1 // pred_fallthru
      _
    // Predicated region
    $region22: #{tpu_custom_call.1} parent=1 // pred_check
      _
    $region23: #{tpu_custom_call.1} parent=1 // pred_check_branch
      %160 = sbr.rel (0) target = $region25
    $region24: #{tpu_custom_call.1} parent=1 // pred_region
      %161 = dma.done [#allocation4], 128
    $region25: #{tpu_custom_call.1} parent=1 // pred_fallthru
      _
    %162 = vsyncpa [#allocation3], 1
    %163 = vsyncpa [#allocation4], 1
    %164 = vsyncpa [#allocation5], 1

</llo_original>
